<compile_context>
chip_gen: v5e
topology: v5e:2x2
jax: 0.10.0
libtpu: 0.0.40
codegen_flags: <defaults>
</compile_context>

<pallas_src>
import functools

import jax
import jax.numpy as jnp
from jax.experimental import pallas as pl
from jax.experimental.pallas import tpu as pltpu

BN_EPS = 1e-5


# --------------------------------------------------------------------------
# Kernel 1: per-batch-element DeepMax1 -> DeepMax2 -> pooled mean + sum(x^2)
# --------------------------------------------------------------------------
def lnet_stage_kernel(
    dw1_ref,                 # SMEM (4,): [w0, w1, w2, bias] depthwise conv1 (1 ch)
    x_ref,                   # VMEM (L, 1)  this batch element's input column
    pw1a_ref, pb1a_ref,      # VMEM (1, C1) pointwise-1 weights, MFM half A
    pw1b_ref, pb1b_ref,      # VMEM (1, C1) pointwise-1 weights, MFM half B
    w2f_ref, b2f_ref,        # VMEM (3*C1, 2*C2), (1, 2*C2) dw2 (+) pw2 fused
    stats_ref,               # VMEM (1, 2, C2) out: [pooled mean ; sum(x^2)]
    scr1, scr2,              # VMEM scratch (L, C1), (L/2, C2)
):
    L = x_ref.shape[0]
    C1 = pw1a_ref.shape[1]
    L2 = scr2.shape[0]
    L4 = L2 // 2
    C2 = b2f_ref.shape[1] // 2

    w0 = dw1_ref[0]
    w1 = dw1_ref[1]
    w2 = dw1_ref[2]
    bdw1 = dw1_ref[3]

    # ---------------- DeepMax block 1 ----------------
    # depthwise conv (1 channel, k=3, pad=1): sublane roll + in-kernel edge masks
    x = x_ref[...]                                                  # (L, 1)
    r1 = jax.lax.broadcasted_iota(jnp.int32, (L, 1), 0)
    mL1 = (r1 > 0).astype(jnp.float32)                              # 0 at l == 0
    mR1 = (r1 < L - 1).astype(jnp.float32)                          # 0 at l == L-1
    xm = mL1 * pltpu.roll(x, 1, axis=0)                             # x[l-1]
    xp = mR1 * pltpu.roll(x, L - 1, axis=0)                         # x[l+1] (== roll -1)
    y1 = w0 * xm + w1 * x + w2 * xp + bdw1                          # (L, 1)

    # pointwise conv 1 -> 2*C1 with MFM, as two (1, C1) halves (no lane slicing)
    h1 = jnp.maximum(y1 * pw1a_ref[...] + pb1a_ref[...],
                     y1 * pw1b_ref[...] + pb1b_ref[...])            # (L, C1)

    # MaxPool1d(2,2): roll+max in registers, one store, one strided read
    m1 = jnp.maximum(h1, pltpu.roll(h1, L - 1, axis=0))
    scr1[...] = m1
    p1 = scr1[pl.ds(0, L2, 2), :]                                   # (L2, C1)

    # ---------------- DeepMax block 2 ----------------
    # depthwise conv fused into the pointwise matmul: build [x(l-1)|x(l)|x(l+1)]
    r2 = jax.lax.broadcasted_iota(jnp.int32, (L2, 1), 0)
    mL2 = (r2 > 0).astype(jnp.float32)
    mR2 = (r2 < L2 - 1).astype(jnp.float32)
    pm = mL2 * pltpu.roll(p1, 1, axis=0)
    pp = mR2 * pltpu.roll(p1, L2 - 1, axis=0)
    y2cat = jnp.concatenate([pm, p1, pp], axis=1)                   # (L2, 3*C1)

    # single MXU matmul, K = 3*C1 = 96, N = 2*C2 = 128, then MFM
    h2cat = jnp.dot(y2cat, w2f_ref[...],
                    preferred_element_type=jnp.float32) + b2f_ref[...]
    h2 = jnp.maximum(h2cat[:, :C2], h2cat[:, C2:])                  # (L2, C2)

    m2 = jnp.maximum(h2, pltpu.roll(h2, L2 - 1, axis=0))
    scr2[...] = m2
    p2 = scr2[pl.ds(0, L4, 2), :]                                   # (L4, C2)

    # ---- AdaptiveAvgPool1d(1) + single-pass BN partial statistics ----
    rm = jnp.sum(p2, axis=0, keepdims=True) * (1.0 / L4)            # (1, C2) pooled mean
    ssq = jnp.sum(p2 * p2, axis=0, keepdims=True)                   # (1, C2) sum of squares
    stats_ref[0] = jnp.concatenate([rm, ssq], axis=0)               # (2, C2)


# --------------------------------------------------------------------------
# Kernel 2 (tiny, gridless): BN finalize + classifier
# --------------------------------------------------------------------------
def lnet_head_kernel(rm_ref, ssq_ref, gamma_ref, beta_ref, wc_ref, bc_ref,
                     out_ref, *, n_rows):
    rm = rm_ref[...]                                                # (B, C2)
    ssq = ssq_ref[...]                                              # (B, C2)
    B = rm.shape[0]

    mu = jnp.sum(rm, axis=0, keepdims=True) * (1.0 / B)             # global channel mean
    ex2 = jnp.sum(ssq, axis=0, keepdims=True) * (1.0 / n_rows)      # E[x^2]
    var = ex2 - mu * mu                                             # biased variance
    scale = gamma_ref[...] * jax.lax.rsqrt(var + BN_EPS)
    shift = beta_ref[...] - mu * scale

    # per-channel BN affine commutes with the length average
    pooled = rm * scale + shift                                     # (B, C2)
    out_ref[...] = (jnp.dot(pooled, wc_ref[...],
                            preferred_element_type=jnp.float32) + bc_ref[...])


# --------------------------------------------------------------------------
# Parameters
# --------------------------------------------------------------------------
def init_params(key, num_classes, c1=32):
    """Synthetic parameters in the PyTorch module's native shapes."""
    c2 = 2 * c1
    ks = jax.random.split(key, 12)
    r = lambda k, shp, s=0.3: (s * jax.random.normal(k, shp)).astype(jnp.float32)
    return dict(
        dw1_w=r(ks[0], (3,)),             # Conv1d(1,1,3)  weight (taps l-1,l,l+1)
        dw1_b=r(ks[1], (1,)),
        pw1_w=r(ks[2], (2 * c1,)),        # Conv1d(1,2*c1,1)
        pw1_b=r(ks[3], (2 * c1,)),
        dw2_w=r(ks[4], (c1, 3)),          # Conv1d(c1,c1,3,groups=c1)
        dw2_b=r(ks[5], (c1,)),
        pw2_w=r(ks[6], (2 * c2, c1)),     # Conv1d(c1,2*c2,1)
        pw2_b=r(ks[7], (2 * c2,)),
        gamma=(1.0 + r(ks[8], (c2,), 0.1)).astype(jnp.float32),   # BatchNorm1d(c2)
        beta=r(ks[9], (c2,), 0.1),
        wc=r(ks[10], (num_classes, c2)),  # Linear(c2, num_classes)
        bc=r(ks[11], (num_classes,)),
    )


def pack_params(R):
    """Kernel-layout parameters (fused / transposed); done once, outside kernels."""
    c1 = R["dw2_w"].shape[0]
    c2 = 2 * c1
    nc = R["wc"].shape[0]

    pw2 = R["pw2_w"].T                                 # (c1, 2*c2)
    dw2t = R["dw2_w"].T                                # (3, c1): rows = taps l-1,l,l+1
    # W'[t*c1 + c, o] = dw2[c, t] * pw2[c, o]  (exact fusion: both ops are linear)
    w2f = (dw2t[:, :, None] * pw2[None, :, :]).reshape(3 * c1, 2 * c2)
    b2f = (jnp.sum(R["dw2_b"][:, None] * pw2, axis=0, keepdims=True)
           + R["pw2_b"].reshape(1, 2 * c2))

    return dict(
        dw1=jnp.concatenate([R["dw1_w"], R["dw1_b"]]).astype(jnp.float32),  # (4,)
        pw1a=R["pw1_w"][:c1].reshape(1, c1),
        pb1a=R["pw1_b"][:c1].reshape(1, c1),
        pw1b=R["pw1_w"][c1:].reshape(1, c1),
        pb1b=R["pw1_b"][c1:].reshape(1, c1),
        w2f=w2f.astype(jnp.float32),
        b2f=b2f.astype(jnp.float32),
        gamma=R["gamma"].reshape(1, c2),
        beta=R["beta"].reshape(1, c2),
        wc=R["wc"].T.reshape(c2, nc),
        bc=R["bc"].reshape(1, nc),
    )


# --------------------------------------------------------------------------
# Forward wrapper
# --------------------------------------------------------------------------
def lnet_forward(x, KP):
    """x: (B, num_features) float32 -> logits (B, num_classes)."""
    B, L = x.shape
    assert L % 32 == 0, "num_features must be a multiple of 32"
    L2, L4 = L // 2, L // 4
    C1 = KP["pw1a"].shape[1]
    C2 = KP["gamma"].shape[1]
    NC = KP["wc"].shape[1]

    x_col = x.reshape(B * L, 1).astype(jnp.float32)    # row = b*L + l, channel on lanes

    # ---- pass 1: batch-parallel grid, one batch element per step ----
    stats = pl.pallas_call(
        lnet_stage_kernel,
        out_shape=jax.ShapeDtypeStruct((B, 2, C2), jnp.float32),
        grid=(B,),
        in_specs=[
            pl.BlockSpec(memory_space=pltpu.MemorySpace.SMEM),       # dw1 scalars
            pl.BlockSpec((L, 1), lambda b: (b, 0)),                  # x column tile
            pl.BlockSpec((1, C1), lambda b: (0, 0)),                 # pw1a
            pl.BlockSpec((1, C1), lambda b: (0, 0)),                 # pb1a
            pl.BlockSpec((1, C1), lambda b: (0, 0)),                 # pw1b
            pl.BlockSpec((1, C1), lambda b: (0, 0)),                 # pb1b
            pl.BlockSpec((3 * C1, 2 * C2), lambda b: (0, 0)),        # fused W2
            pl.BlockSpec((1, 2 * C2), lambda b: (0, 0)),             # fused b2
        ],
        out_specs=pl.BlockSpec((1, 2, C2), lambda b: (b, 0, 0)),
        scratch_shapes=[
            pltpu.VMEM((L, C1), jnp.float32),      # stage-1 pre-pool (per tile)
            pltpu.VMEM((L2, C2), jnp.float32),     # stage-2 pre-pool (per tile)
        ],
        compiler_params=pltpu.CompilerParams(
            dimension_semantics=("parallel",)),
    )(KP["dw1"], x_col, KP["pw1a"], KP["pb1a"], KP["pw1b"], KP["pb1b"],
      KP["w2f"], KP["b2f"])

    rm = stats[:, 0, :]      # (B, C2) per-element pooled means
    ssq = stats[:, 1, :]     # (B, C2) per-element sum of squares

    # ---- pass 2: tiny BN-finalize + classifier kernel ----
    return pl.pallas_call(
        functools.partial(lnet_head_kernel, n_rows=float(B * L4)),
        out_shape=jax.ShapeDtypeStruct((B, NC), jnp.float32),
        in_specs=[pl.BlockSpec(memory_space=pltpu.MemorySpace.VMEM)] * 6,
        out_specs=pl.BlockSpec(memory_space=pltpu.MemorySpace.VMEM),
    )(rm, ssq, KP["gamma"], KP["beta"], KP["wc"], KP["bc"])


# --------------------------------------------------------------------------
# Pure-JAX reference (unfused, channels-last), for verification only
# --------------------------------------------------------------------------
def lnet_reference(x, R):
    B, L = x.shape
    c1 = R["dw2_w"].shape[0]
    c2 = 2 * c1
    hp = jax.lax.Precision.HIGHEST
    w0, w1, w2 = R["dw1_w"][0], R["dw1_w"][1], R["dw1_w"][2]
    bdw1 = R["dw1_b"][0]

    z = jnp.zeros((B, 1), jnp.float32)
    xm = jnp.concatenate([z, x[:, :-1]], axis=1)
    xp = jnp.concatenate([x[:, 1:], z], axis=1)
    y1 = w0 * xm + w1 * x + w2 * xp + bdw1                              # (B, L)
    h1cat = y1[:, :, None] * R["pw1_w"] + R["pw1_b"]                    # (B, L, 2*c1)
    h1 = jnp.maximum(h1cat[..., :c1], h1cat[..., c1:])
    p1 = jnp.max(h1.reshape(B, L // 2, 2, c1), axis=2)                  # (B, L/2, c1)

    zr = jnp.zeros((B, 1, c1), jnp.float32)
    pm = jnp.concatenate([zr, p1[:, :-1]], axis=1)
    pp = jnp.concatenate([p1[:, 1:], zr], axis=1)
    dw2 = R["dw2_w"]                                                     # (c1, 3)
    y2 = dw2[:, 0] * pm + dw2[:, 1] * p1 + dw2[:, 2] * pp + R["dw2_b"]
    h2cat = jnp.einsum("blc,oc->blo", y2, R["pw2_w"], precision=hp) + R["pw2_b"]
    h2 = jnp.maximum(h2cat[..., :c2], h2cat[..., c2:])
    p2 = jnp.max(h2.reshape(B, L // 4, 2, c2), axis=2)                   # (B, L/4, c2)

    mu = p2.mean(axis=(0, 1), keepdims=True)
    var = ((p2 - mu) ** 2).mean(axis=(0, 1), keepdims=True)
    hbn = (p2 - mu) / jnp.sqrt(var + BN_EPS) * R["gamma"] + R["beta"]
    pooled = hbn.mean(axis=1)                                            # (B, c2)
    return jnp.dot(pooled, R["wc"].T, precision=hp) + R["bc"]


if __name__ == "__main__":
    B, NUM_FEATURES, NUM_CLASSES = 2, 64, 10
    key = jax.random.PRNGKey(0)
    kx, kp = jax.random.split(key)
    x = jax.random.normal(kx, (B, NUM_FEATURES), dtype=jnp.float32)

    raw = init_params(kp, NUM_CLASSES, c1=32)
    KP = pack_params(raw)

    out = jax.block_until_ready(lnet_forward(x, KP))
    ref = lnet_reference(x, raw)

    assert out.shape == (B, NUM_CLASSES), out.shape
    err = float(jnp.max(jnp.abs(out - ref)))
    if not (err < 2e-2):
        raise AssertionError(f"Pallas kernel mismatch vs reference: max abs err {err}")
    print("KERNEL_OK")
</pallas_src>

<mosaic_0001>
module attributes {stable_mosaic.version = 11 : i64} {
  func.func @lnet_stage_kernel(%arg0: i32, %arg1: memref<4xf32, #tpu.memory_space<smem>>, %arg2: memref<64x1xf32, #tpu.memory_space<vmem>>, %arg3: memref<1x32xf32, #tpu.memory_space<vmem>>, %arg4: memref<1x32xf32, #tpu.memory_space<vmem>>, %arg5: memref<1x32xf32, #tpu.memory_space<vmem>>, %arg6: memref<1x32xf32, #tpu.memory_space<vmem>>, %arg7: memref<96x128xf32, #tpu.memory_space<vmem>>, %arg8: memref<1x128xf32, #tpu.memory_space<vmem>>, %arg9: memref<1x2x64xf32, #tpu.memory_space<vmem>>, %arg10: memref<64x32xf32, #tpu.memory_space<vmem>>, %arg11: memref<32x64xf32, #tpu.memory_space<vmem>>) attributes {dimension_semantics = [#tpu.dimension_semantics<parallel>], iteration_bounds = array<i64: 2>, scalar_prefetch = 0 : i64, scratch_operands = 2 : i64, tpu.core_type = #tpu.core_type<tc>, window_params = [{transform_indices = @transform_0, window_bounds = array<i64: 4>}, {transform_indices = @transform_1, window_bounds = array<i64: 64, 1>}, {pipeline_mode = #tpu.pipeline_mode<synchronous>, transform_indices = @transform_2, window_bounds = array<i64: 1, 32>}, {pipeline_mode = #tpu.pipeline_mode<synchronous>, transform_indices = @transform_3, window_bounds = array<i64: 1, 32>}, {pipeline_mode = #tpu.pipeline_mode<synchronous>, transform_indices = @transform_4, window_bounds = array<i64: 1, 32>}, {pipeline_mode = #tpu.pipeline_mode<synchronous>, transform_indices = @transform_5, window_bounds = array<i64: 1, 32>}, {pipeline_mode = #tpu.pipeline_mode<synchronous>, transform_indices = @transform_6, window_bounds = array<i64: 96, 128>}, {pipeline_mode = #tpu.pipeline_mode<synchronous>, transform_indices = @transform_7, window_bounds = array<i64: 1, 128>}, {transform_indices = @transform_8, window_bounds = array<i64: 1, 2, 64>}]} {
    %c0 = arith.constant 0 : index
    %0 = memref.load %arg1[%c0] : memref<4xf32, #tpu.memory_space<smem>>
    %c1 = arith.constant 1 : index
    %1 = memref.load %arg1[%c1] : memref<4xf32, #tpu.memory_space<smem>>
    %c2 = arith.constant 2 : index
    %2 = memref.load %arg1[%c2] : memref<4xf32, #tpu.memory_space<smem>>
    %c3 = arith.constant 3 : index
    %3 = memref.load %arg1[%c3] : memref<4xf32, #tpu.memory_space<smem>>
    %c0_0 = arith.constant 0 : index
    %c0_1 = arith.constant 0 : index
    %4 = vector.load %arg2[%c0_0, %c0_1] : memref<64x1xf32, #tpu.memory_space<vmem>>, vector<64x1xf32>
    %5 = tpu.iota {dimensions = array<i32: 0>} : vector<64x1xi32>
    %c0_i32 = arith.constant 0 : i32
    %6 = vector.broadcast %c0_i32 : i32 to vector<64x1xi32>
    %7 = arith.cmpi sgt, %5, %6 : vector<64x1xi32>
    %8 = arith.extui %7 : vector<64x1xi1> to vector<64x1xi32>
    %9 = arith.sitofp %8 : vector<64x1xi32> to vector<64x1xf32>
    %c63_i32 = arith.constant 63 : i32
    %10 = vector.broadcast %c63_i32 : i32 to vector<64x1xi32>
    %11 = arith.cmpi slt, %5, %10 : vector<64x1xi32>
    %12 = arith.extui %11 : vector<64x1xi1> to vector<64x1xi32>
    %13 = arith.sitofp %12 : vector<64x1xi32> to vector<64x1xf32>
    %c1_i32 = arith.constant 1 : i32
    %14 = tpu.dynamic_rotate %4 by %c1_i32 dim 0 : vector<64x1xf32>, i32 -> vector<64x1xf32>
    %15 = arith.mulf %9, %14 : vector<64x1xf32>
    %c63_i32_2 = arith.constant 63 : i32
    %16 = tpu.dynamic_rotate %4 by %c63_i32_2 dim 0 : vector<64x1xf32>, i32 -> vector<64x1xf32>
    %17 = arith.mulf %13, %16 : vector<64x1xf32>
    %18 = vector.broadcast %0 : f32 to vector<64x1xf32>
    %19 = arith.mulf %18, %15 : vector<64x1xf32>
    %20 = vector.broadcast %1 : f32 to vector<64x1xf32>
    %21 = arith.mulf %20, %4 : vector<64x1xf32>
    %22 = arith.addf %19, %21 : vector<64x1xf32>
    %23 = vector.broadcast %2 : f32 to vector<64x1xf32>
    %24 = arith.mulf %23, %17 : vector<64x1xf32>
    %25 = arith.addf %22, %24 : vector<64x1xf32>
    %26 = vector.broadcast %3 : f32 to vector<64x1xf32>
    %27 = arith.addf %25, %26 : vector<64x1xf32>
    %c0_3 = arith.constant 0 : index
    %c0_4 = arith.constant 0 : index
    %28 = vector.load %arg3[%c0_3, %c0_4] : memref<1x32xf32, #tpu.memory_space<vmem>>, vector<1x32xf32>
    %29 = vector.broadcast %27 : vector<64x1xf32> to vector<64x32xf32>
    %30 = vector.broadcast %28 : vector<1x32xf32> to vector<64x32xf32>
    %31 = arith.mulf %29, %30 : vector<64x32xf32>
    %c0_5 = arith.constant 0 : index
    %c0_6 = arith.constant 0 : index
    %32 = vector.load %arg4[%c0_5, %c0_6] : memref<1x32xf32, #tpu.memory_space<vmem>>, vector<1x32xf32>
    %33 = vector.broadcast %32 : vector<1x32xf32> to vector<64x32xf32>
    %34 = arith.addf %31, %33 : vector<64x32xf32>
    %c0_7 = arith.constant 0 : index
    %c0_8 = arith.constant 0 : index
    %35 = vector.load %arg5[%c0_7, %c0_8] : memref<1x32xf32, #tpu.memory_space<vmem>>, vector<1x32xf32>
    %36 = vector.broadcast %27 : vector<64x1xf32> to vector<64x32xf32>
    %37 = vector.broadcast %35 : vector<1x32xf32> to vector<64x32xf32>
    %38 = arith.mulf %36, %37 : vector<64x32xf32>
    %c0_9 = arith.constant 0 : index
    %c0_10 = arith.constant 0 : index
    %39 = vector.load %arg6[%c0_9, %c0_10] : memref<1x32xf32, #tpu.memory_space<vmem>>, vector<1x32xf32>
    %40 = vector.broadcast %39 : vector<1x32xf32> to vector<64x32xf32>
    %41 = arith.addf %38, %40 : vector<64x32xf32>
    %42 = arith.maximumf %34, %41 : vector<64x32xf32>
    %c63_i32_11 = arith.constant 63 : i32
    %43 = tpu.dynamic_rotate %42 by %c63_i32_11 dim 0 : vector<64x32xf32>, i32 -> vector<64x32xf32>
    %44 = arith.maximumf %42, %43 : vector<64x32xf32>
    %c0_12 = arith.constant 0 : index
    %c0_13 = arith.constant 0 : index
    %45 = vector.load %arg10[%c0_12, %c0_13] : memref<64x32xf32, #tpu.memory_space<vmem>>, vector<64x32xf32>
    tpu.vector_store %arg10[%c0_12, %c0_13], %44 {strides = array<i32>} : memref<64x32xf32, #tpu.memory_space<vmem>>, vector<64x32xf32>,
    %c0_14 = arith.constant 0 : index
    %c0_15 = arith.constant 0 : index
    %46 = tpu.strided_load %arg10[%c0_14, %c0_15] {strides = array<i32: 2, 1>} : memref<64x32xf32, #tpu.memory_space<vmem>>, vector<32x32xf32>
    %47 = tpu.iota {dimensions = array<i32: 0>} : vector<32x1xi32>
    %c0_i32_16 = arith.constant 0 : i32
    %48 = vector.broadcast %c0_i32_16 : i32 to vector<32x1xi32>
    %49 = arith.cmpi sgt, %47, %48 : vector<32x1xi32>
    %50 = arith.extui %49 : vector<32x1xi1> to vector<32x1xi32>
    %51 = arith.sitofp %50 : vector<32x1xi32> to vector<32x1xf32>
    %c31_i32 = arith.constant 31 : i32
    %52 = vector.broadcast %c31_i32 : i32 to vector<32x1xi32>
    %53 = arith.cmpi slt, %47, %52 : vector<32x1xi32>
    %54 = arith.extui %53 : vector<32x1xi1> to vector<32x1xi32>
    %55 = arith.sitofp %54 : vector<32x1xi32> to vector<32x1xf32>
    %c1_i32_17 = arith.constant 1 : i32
    %56 = tpu.dynamic_rotate %46 by %c1_i32_17 dim 0 : vector<32x32xf32>, i32 -> vector<32x32xf32>
    %57 = vector.broadcast %51 : vector<32x1xf32> to vector<32x32xf32>
    %58 = arith.mulf %57, %56 : vector<32x32xf32>
    %c31_i32_18 = arith.constant 31 : i32
    %59 = tpu.dynamic_rotate %46 by %c31_i32_18 dim 0 : vector<32x32xf32>, i32 -> vector<32x32xf32>
    %60 = vector.broadcast %55 : vector<32x1xf32> to vector<32x32xf32>
    %61 = arith.mulf %60, %59 : vector<32x32xf32>
    %62 = tpu.concatenate %58, %46, %61 in 1 : vector<32x32xf32>, vector<32x32xf32>, vector<32x32xf32> -> vector<32x96xf32>
    %c0_19 = arith.constant 0 : index
    %c0_20 = arith.constant 0 : index
    %63 = vector.load %arg7[%c0_19, %c0_20] : memref<96x128xf32, #tpu.memory_space<vmem>>, vector<96x128xf32>
    %cst = arith.constant dense<0.000000e+00> : vector<32x128xf32>
    %64 = tpu.matmul %62, %63, %cst {dimension_numbers = #tpu.dot_dimension_numbers<[1], [0], [0], [1], [0, 0, 1, 1], [], []>} : vector<32x96xf32>, vector<96x128xf32>, vector<32x128xf32> -> vector<32x128xf32>
    %c0_21 = arith.constant 0 : index
    %c0_22 = arith.constant 0 : index
    %65 = vector.load %arg8[%c0_21, %c0_22] : memref<1x128xf32, #tpu.memory_space<vmem>>, vector<1x128xf32>
    %66 = vector.broadcast %65 : vector<1x128xf32> to vector<32x128xf32>
    %67 = arith.addf %64, %66 : vector<32x128xf32>
    %68 = vector.extract_strided_slice %67 {offsets = [0, 0], sizes = [32, 64], strides = [1, 1]} : vector<32x128xf32> to vector<32x64xf32>
    %69 = vector.extract_strided_slice %67 {offsets = [0, 64], sizes = [32, 64], strides = [1, 1]} : vector<32x128xf32> to vector<32x64xf32>
    %70 = arith.maximumf %68, %69 : vector<32x64xf32>
    %c31_i32_23 = arith.constant 31 : i32
    %71 = tpu.dynamic_rotate %70 by %c31_i32_23 dim 0 : vector<32x64xf32>, i32 -> vector<32x64xf32>
    %72 = arith.maximumf %70, %71 : vector<32x64xf32>
    %c0_24 = arith.constant 0 : index
    %c0_25 = arith.constant 0 : index
    %73 = vector.load %arg11[%c0_24, %c0_25] : memref<32x64xf32, #tpu.memory_space<vmem>>, vector<32x64xf32>
    tpu.vector_store %arg11[%c0_24, %c0_25], %72 {strides = array<i32>} : memref<32x64xf32, #tpu.memory_space<vmem>>, vector<32x64xf32>,
    %c0_26 = arith.constant 0 : index
    %c0_27 = arith.constant 0 : index
    %74 = tpu.strided_load %arg11[%c0_26, %c0_27] {strides = array<i32: 2, 1>} : memref<32x64xf32, #tpu.memory_space<vmem>>, vector<16x64xf32>
    %cst_28 = arith.constant dense<0.000000e+00> : vector<64xf32>
    %75 = vector.multi_reduction <add>, %74, %cst_28 [0] : vector<16x64xf32> to vector<64xf32>
    %76 = vector.shape_cast %75 : vector<64xf32> to vector<1x64xf32>
    %cst_29 = arith.constant 6.250000e-02 : f32
    %77 = vector.broadcast %cst_29 : f32 to vector<1x64xf32>
    %78 = arith.mulf %76, %77 : vector<1x64xf32>
    %79 = arith.mulf %74, %74 : vector<16x64xf32>
    %cst_30 = arith.constant dense<0.000000e+00> : vector<64xf32>
    %80 = vector.multi_reduction <add>, %79, %cst_30 [0] : vector<16x64xf32> to vector<64xf32>
    %81 = vector.shape_cast %80 : vector<64xf32> to vector<1x64xf32>
    %82 = tpu.concatenate %78, %81 in 0 : vector<1x64xf32>, vector<1x64xf32> -> vector<2x64xf32>
    %c0_31 = arith.constant 0 : index
    %c0_32 = arith.constant 0 : index
    %c0_33 = arith.constant 0 : index
    %83 = vector.load %arg9[%c0_31, %c0_32, %c0_33] : memref<1x2x64xf32, #tpu.memory_space<vmem>>, vector<1x2x64xf32>
    %84 = vector.shape_cast %83 : vector<1x2x64xf32> to vector<2x64xf32>
    %85 = vector.shape_cast %82 : vector<2x64xf32> to vector<1x2x64xf32>
    tpu.vector_store %arg9[%c0_31, %c0_32, %c0_33], %85 {strides = array<i32>} : memref<1x2x64xf32, #tpu.memory_space<vmem>>, vector<1x2x64xf32>,
    return
  }
  func.func @transform_0(%arg0: i32) -> i32 {
    %c0_i32 = arith.constant 0 : i32
    %c0_i32_0 = arith.constant 0 : i32
    return %c0_i32 : i32
  }
  func.func @transform_1(%arg0: i32) -> (i32, i32) {
    %c0_i32 = arith.constant 0 : i32
    %c0_i32_0 = arith.constant 0 : i32
    return %arg0, %c0_i32 : i32, i32
  }
  func.func @transform_2(%arg0: i32) -> (i32, i32) {
    %c0_i32 = arith.constant 0 : i32
    %c0_i32_0 = arith.constant 0 : i32
    %c0_i32_1 = arith.constant 0 : i32
    return %c0_i32, %c0_i32_0 : i32, i32
  }
  func.func @transform_3(%arg0: i32) -> (i32, i32) {
    %c0_i32 = arith.constant 0 : i32
    %c0_i32_0 = arith.constant 0 : i32
    %c0_i32_1 = arith.constant 0 : i32
    return %c0_i32, %c0_i32_0 : i32, i32
  }
  func.func @transform_4(%arg0: i32) -> (i32, i32) {
    %c0_i32 = arith.constant 0 : i32
    %c0_i32_0 = arith.constant 0 : i32
    %c0_i32_1 = arith.constant 0 : i32
    return %c0_i32, %c0_i32_0 : i32, i32
  }
  func.func @transform_5(%arg0: i32) -> (i32, i32) {
    %c0_i32 = arith.constant 0 : i32
    %c0_i32_0 = arith.constant 0 : i32
    %c0_i32_1 = arith.constant 0 : i32
    return %c0_i32, %c0_i32_0 : i32, i32
  }
  func.func @transform_6(%arg0: i32) -> (i32, i32) {
    %c0_i32 = arith.constant 0 : i32
    %c0_i32_0 = arith.constant 0 : i32
    %c0_i32_1 = arith.constant 0 : i32
    return %c0_i32, %c0_i32_0 : i32, i32
  }
  func.func @transform_7(%arg0: i32) -> (i32, i32) {
    %c0_i32 = arith.constant 0 : i32
    %c0_i32_0 = arith.constant 0 : i32
    %c0_i32_1 = arith.constant 0 : i32
    return %c0_i32, %c0_i32_0 : i32, i32
  }
  func.func @transform_8(%arg0: i32) -> (i32, i32, i32) {
    %c0_i32 = arith.constant 0 : i32
    %c0_i32_0 = arith.constant 0 : i32
    %c0_i32_1 = arith.constant 0 : i32
    return %arg0, %c0_i32, %c0_i32_0 : i32, i32, i32
  }
}

</mosaic_0001>

<llo_original>
// kernel: tpu_custom_call.1
$region0: #{tpu_custom_call.1}
  #allocation0 [shape = 'u32[]', space=smem, size = 0x4, offset = 0x4, fixed_abs, tag = 'smem constant byte address 0x4 - core index']
  #allocation1 [shape = 'u32[72,128]{1,0:T(1,128)}', space=vmem, size = 0x9000, scoped, tag = 'internal scratch']
  #allocation2 [shape = 'f32[64,32]{1,0:T(8,128)}', space=vmem, size = 0x8000, scoped, tag = 'scratch operand']
  #allocation3 [shape = 'f32[32,64]{1,0:T(8,128)}', space=vmem, size = 0x4000, scoped, tag = 'scratch operand']
  %s0 = inlined_call_operand.vmem [shape: f32[4], index: 0, kind: input, shape index: {}]
  %s1 = inlined_call_operand.vmem [shape: f32[128,1], index: 1, kind: input, shape index: {}]
  %s2 = inlined_call_operand.vmem [shape: f32[1,32], index: 2, kind: input, shape index: {}]
  %s3 = inlined_call_operand.vmem [shape: f32[1,32], index: 3, kind: input, shape index: {}]
  %s4 = inlined_call_operand.vmem [shape: f32[1,32], index: 4, kind: input, shape index: {}]
  %s5 = inlined_call_operand.vmem [shape: f32[1,32], index: 5, kind: input, shape index: {}]
  %s6 = inlined_call_operand.vmem [shape: f32[96,128], index: 6, kind: input, shape index: {}]
  %s7 = inlined_call_operand.vmem [shape: f32[1,128], index: 7, kind: input, shape index: {}]
  %s8 = inlined_call_operand.hbm [shape: f32[2,2,64], index: 8, kind: output, shape index: {}]
  %s9 = sld [smem:[#allocation0]]
  $region69: #{tpu_custom_call.1} parent=0
    _
  %s11 = ssub.s32 1, %s9
  %s12 = scalar_select 0, %s11, %s9
  $region1: #{tpu_custom_call.1} parent=0
    #allocation4 [shape = 'u8[512]{0}', space=smem, size = 0x200, scoped, tag = 'input window, operand 0, single buffered']
    #allocation5 [shape = 's32[2]{0}', space=sflag, size = 0x8, scoped, tag = 'scoped memory for tpu_custom_call.1']
    #allocation6 [shape = 's32[2]{0}', space=sflag, size = 0x8, scoped, tag = 'scoped memory for tpu_custom_call.1']
    #allocation7 [shape = 'u8[2048]{0}', space=vmem, size = 0x800, scoped, tag = 'output window, operand 0']
    %13 = vsyncpa [#allocation6], 0
    %14 = vsyncpa [#allocation5], 0
    %s15 = scalar_lea.sflag [#allocation5], 1
    %16 = vsyncpa %s15, 0
    loop: start=0, step=1, limit=4
    $region2: #{tpu_custom_call.1} parent=1 // loop_pre_header
      _
    $region3: #{tpu_custom_call.1} parent=1 // loop_header
      %s18 = sphi 0, %s22
      %p19 = scmp.ge.s32.totalorder %s18, 4
      %s26 = sphi 0, %s26
      %s28 = sphi 0, %s26
      %s29 = sphi 0, %s28
      %s43 = sphi 0, %s29
      %s49 = sphi 0, %s51
      %s52 = sphi 0, %s49
      %s53 = sphi 0, %s52
      %s69 = sphi 0, %s53
      %s73 = sphi 0, %s73
      %s75 = sphi 0, %s73
      %s76 = sphi 0, %s75
      %s90 = sphi 0, %s76
      %s94 = sphi 0, %s94
      %s96 = sphi 0, %s94
      %s97 = sphi 0, %s96
      %s111 = sphi 0, %s97
      %s115 = sphi 0, %s115
      %s117 = sphi 0, %s115
      %s118 = sphi 0, %s117
      %s132 = sphi 0, %s118
      %s136 = sphi 0, %s136
      %s138 = sphi 0, %s136
      %s139 = sphi 0, %s138
      %s153 = sphi 0, %s139
      %s157 = sphi 0, %s157
      %s159 = sphi 0, %s157
      %s160 = sphi 0, %s159
      %s174 = sphi 0, %s160
      %s178 = sphi 0, %s178
      %s180 = sphi 0, %s178
      %s181 = sphi 0, %s180
      %s195 = sphi 0, %s181
      %s201 = sphi 0, %s203
      %s204 = sphi 0, %s201
      %s205 = sphi 0, %s204
      %s221 = sphi 0, %s205
    $region4: #{tpu_custom_call.1} parent=1 // loop_header_branch
      %21 = sbr.rel (%p19) target = $region8
    $region5: #{tpu_custom_call.1} parent=1 // loop_body
      %s23 = ssub.s32 %s18, 1
      %s24 = ssub.s32 %s18, 2
      %s25 = sadd.s32 %s18, 1
      %s27 = sadd.s32 %s26, 1
      %p30 = scmp.eq.s32.totalorder %s18, 1
      %p31 = scmp.ne.s32.totalorder %s26, %s28
      %p32 = scmp.eq.s32.totalorder %s18, 0
      %p33 = por %p31, %p32
      %p34 = scmp.ne.s32.totalorder %s26, %s28
      %p35 = scmp.eq.s32.totalorder %s23, 1
      %p36 = por %p34, %p35
      %p37 = scmp.ne.s32.totalorder %s28, %s29
      %p38 = scmp.eq.s32.totalorder %s23, 0
      %p39 = por %p37, %p38
      %p40 = scmp.ne.s32.totalorder %s28, %s29
      %p41 = scmp.eq.s32.totalorder %s24, 1
      %p42 = por %p40, %p41
      %p44 = scmp.ne.s32.totalorder %s29, %s43
      %p45 = scmp.eq.s32.totalorder %s24, 0
      %p46 = por %p44, %p45
      %s47 = ssub.s32 %s18, %s25
      %p48 = scmp.eq.s32.totalorder %s47, 0
      %s50 = sadd.s32 %s49, 1
      %s51 = scalar_select %p48, %s49, %s50
      %p54 = pneg %p48
      %p55 = scmp.eq.s32.totalorder %s18, 1
      %p56 = por %p54, %p55
      %p57 = scmp.ne.s32.totalorder %s49, %s52
      %p58 = scmp.eq.s32.totalorder %s18, 0
      %p59 = por %p57, %p58
      %p60 = scmp.ne.s32.totalorder %s49, %s52
      %p61 = scmp.eq.s32.totalorder %s23, 1
      %p62 = por %p60, %p61
      %p63 = scmp.ne.s32.totalorder %s52, %s53
      %p64 = scmp.eq.s32.totalorder %s23, 0
      %p65 = por %p63, %p64
      %p66 = scmp.ne.s32.totalorder %s52, %s53
      %p67 = scmp.eq.s32.totalorder %s24, 1
      %p68 = por %p66, %p67
      %p70 = scmp.ne.s32.totalorder %s53, %s69
      %p71 = scmp.eq.s32.totalorder %s24, 0
      %p72 = por %p70, %p71
      %s74 = sadd.s32 %s73, 1
      %p77 = scmp.eq.s32.totalorder %s18, 1
      %p78 = scmp.ne.s32.totalorder %s73, %s75
      %p79 = scmp.eq.s32.totalorder %s18, 0
      %p80 = por %p78, %p79
      %p81 = scmp.ne.s32.totalorder %s73, %s75
      %p82 = scmp.eq.s32.totalorder %s23, 1
      %p83 = por %p81, %p82
      %p84 = scmp.ne.s32.totalorder %s75, %s76
      %p85 = scmp.eq.s32.totalorder %s23, 0
      %p86 = por %p84, %p85
      %p87 = scmp.ne.s32.totalorder %s75, %s76
      %p88 = scmp.eq.s32.totalorder %s24, 1
      %p89 = por %p87, %p88
      %p91 = scmp.ne.s32.totalorder %s76, %s90
      %p92 = scmp.eq.s32.totalorder %s24, 0
      %p93 = por %p91, %p92
      %s95 = sadd.s32 %s94, 1
      %p98 = scmp.eq.s32.totalorder %s18, 1
      %p99 = scmp.ne.s32.totalorder %s94, %s96
      %p100 = scmp.eq.s32.totalorder %s18, 0
      %p101 = por %p99, %p100
      %p102 = scmp.ne.s32.totalorder %s94, %s96
      %p103 = scmp.eq.s32.totalorder %s23, 1
      %p104 = por %p102, %p103
      %p105 = scmp.ne.s32.totalorder %s96, %s97
      %p106 = scmp.eq.s32.totalorder %s23, 0
      %p107 = por %p105, %p106
      %p108 = scmp.ne.s32.totalorder %s96, %s97
      %p109 = scmp.eq.s32.totalorder %s24, 1
      %p110 = por %p108, %p109
      %p112 = scmp.ne.s32.totalorder %s97, %s111
      %p113 = scmp.eq.s32.totalorder %s24, 0
      %p114 = por %p112, %p113
      %s116 = sadd.s32 %s115, 1
      %p119 = scmp.eq.s32.totalorder %s18, 1
      %p120 = scmp.ne.s32.totalorder %s115, %s117
      %p121 = scmp.eq.s32.totalorder %s18, 0
      %p122 = por %p120, %p121
      %p123 = scmp.ne.s32.totalorder %s115, %s117
      %p124 = scmp.eq.s32.totalorder %s23, 1
      %p125 = por %p123, %p124
      %p126 = scmp.ne.s32.totalorder %s117, %s118
      %p127 = scmp.eq.s32.totalorder %s23, 0
      %p128 = por %p126, %p127
      %p129 = scmp.ne.s32.totalorder %s117, %s118
      %p130 = scmp.eq.s32.totalorder %s24, 1
      %p131 = por %p129, %p130
      %p133 = scmp.ne.s32.totalorder %s118, %s132
      %p134 = scmp.eq.s32.totalorder %s24, 0
      %p135 = por %p133, %p134
      %s137 = sadd.s32 %s136, 1
      %p140 = scmp.eq.s32.totalorder %s18, 1
      %p141 = scmp.ne.s32.totalorder %s136, %s138
      %p142 = scmp.eq.s32.totalorder %s18, 0
      %p143 = por %p141, %p142
      %p144 = scmp.ne.s32.totalorder %s136, %s138
      %p145 = scmp.eq.s32.totalorder %s23, 1
      %p146 = por %p144, %p145
      %p147 = scmp.ne.s32.totalorder %s138, %s139
      %p148 = scmp.eq.s32.totalorder %s23, 0
      %p149 = por %p147, %p148
      %p150 = scmp.ne.s32.totalorder %s138, %s139
      %p151 = scmp.eq.s32.totalorder %s24, 1
      %p152 = por %p150, %p151
      %p154 = scmp.ne.s32.totalorder %s139, %s153
      %p155 = scmp.eq.s32.totalorder %s24, 0
      %p156 = por %p154, %p155
      %s158 = sadd.s32 %s157, 1
      %p161 = scmp.eq.s32.totalorder %s18, 1
      %p162 = scmp.ne.s32.totalorder %s157, %s159
      %p163 = scmp.eq.s32.totalorder %s18, 0
      %p164 = por %p162, %p163
      %p165 = scmp.ne.s32.totalorder %s157, %s159
      %p166 = scmp.eq.s32.totalorder %s23, 1
      %p167 = por %p165, %p166
      %p168 = scmp.ne.s32.totalorder %s159, %s160
      %p169 = scmp.eq.s32.totalorder %s23, 0
      %p170 = por %p168, %p169
      %p171 = scmp.ne.s32.totalorder %s159, %s160
      %p172 = scmp.eq.s32.totalorder %s24, 1
      %p173 = por %p171, %p172
      %p175 = scmp.ne.s32.totalorder %s160, %s174
      %p176 = scmp.eq.s32.totalorder %s24, 0
      %p177 = por %p175, %p176
      %s179 = sadd.s32 %s178, 1
      %p182 = scmp.eq.s32.totalorder %s18, 1
      %p183 = scmp.ne.s32.totalorder %s178, %s180
      %p184 = scmp.eq.s32.totalorder %s18, 0
      %p185 = por %p183, %p184
      %p186 = scmp.ne.s32.totalorder %s178, %s180
      %p187 = scmp.eq.s32.totalorder %s23, 1
      %p188 = por %p186, %p187
      %p189 = scmp.ne.s32.totalorder %s180, %s181
      %p190 = scmp.eq.s32.totalorder %s23, 0
      %p191 = por %p189, %p190
      %p192 = scmp.ne.s32.totalorder %s180, %s181
      %p193 = scmp.eq.s32.totalorder %s24, 1
      %p194 = por %p192, %p193
      %p196 = scmp.ne.s32.totalorder %s181, %s195
      %p197 = scmp.eq.s32.totalorder %s24, 0
      %p198 = por %p196, %p197
      %s199 = ssub.s32 %s18, %s25
      %p200 = scmp.eq.s32.totalorder %s199, 0
      %s202 = sadd.s32 %s201, 1
      %s203 = scalar_select %p200, %s201, %s202
      %p206 = pneg %p200
      %p207 = scmp.eq.s32.totalorder %s18, 1
      %p208 = por %p206, %p207
      %p209 = scmp.ne.s32.totalorder %s201, %s204
      %p210 = scmp.eq.s32.totalorder %s18, 0
      %p211 = por %p209, %p210
      %p212 = scmp.ne.s32.totalorder %s201, %s204
      %p213 = scmp.eq.s32.totalorder %s23, 1
      %p214 = por %p212, %p213
      %p215 = scmp.ne.s32.totalorder %s204, %s205
      %p216 = scmp.eq.s32.totalorder %s23, 0
      %p217 = por %p215, %p216
      %p218 = scmp.ne.s32.totalorder %s204, %s205
      %p219 = scmp.eq.s32.totalorder %s24, 1
      %p220 = por %p218, %p219
      %p222 = scmp.ne.s32.totalorder %s205, %s221
      %p223 = scmp.eq.s32.totalorder %s24, 0
      %p224 = por %p222, %p223
      %p225 = scmp.le.s32.totalorder 1, %s18
      %p226 = scmp.lt.s32.totalorder %s18, 3
      %p227 = pnand %p225, %p226
      %p228 = pneg %p227
      // Predicated region
      $region9: #{tpu_custom_call.1} parent=5 // pred_check
        _
      $region10: #{tpu_custom_call.1} parent=5 // pred_check_branch
        %230 = sbr.rel (%p227) target = $region12
      $region11: #{tpu_custom_call.1} parent=5 // pred_region
        %s231 = ssub.s32 %s18, 1
        // Predicated region
        $region13: #{tpu_custom_call.1} parent=11 // pred_check
          %p232 = pneg %p39
        $region14: #{tpu_custom_call.1} parent=11 // pred_check_branch
          %234 = sbr.rel (%p232) target = $region16
        $region15: #{tpu_custom_call.1} parent=11 // pred_region
          %236 = vsyncadd [#allocation6], 0
          %s238 = sshll.u32 %s0, 4
          %s239 = int_to_ptr.vmem [resolvable:$true] %s238
          %241 = dma.vmem_to_smem %s239, 16, [#allocation4], [#allocation6]
        $region16: #{tpu_custom_call.1} parent=11 // pred_fallthru
          _
        // Predicated region
        $region17: #{tpu_custom_call.1} parent=11 // pred_check
          %p242 = pneg %p86
        $region18: #{tpu_custom_call.1} parent=11 // pred_check_branch
          %244 = sbr.rel (%p242) target = $region20
        $region19: #{tpu_custom_call.1} parent=11 // pred_region
          _
        $region20: #{tpu_custom_call.1} parent=11 // pred_fallthru
          _
        // Predicated region
        $region21: #{tpu_custom_call.1} parent=11 // pred_check
          %p245 = pneg %p107
        $region22: #{tpu_custom_call.1} parent=11 // pred_check_branch
          %247 = sbr.rel (%p245) target = $region24
        $region23: #{tpu_custom_call.1} parent=11 // pred_region
          _
        $region24: #{tpu_custom_call.1} parent=11 // pred_fallthru
          _
        // Predicated region
        $region25: #{tpu_custom_call.1} parent=11 // pred_check
          %p248 = pneg %p128
        $region26: #{tpu_custom_call.1} parent=11 // pred_check_branch
          %250 = sbr.rel (%p248) target = $region28
        $region27: #{tpu_custom_call.1} parent=11 // pred_region
          _
        $region28: #{tpu_custom_call.1} parent=11 // pred_fallthru
          _
        // Predicated region
        $region29: #{tpu_custom_call.1} parent=11 // pred_check
          %p251 = pneg %p149
        $region30: #{tpu_custom_call.1} parent=11 // pred_check_branch
          %253 = sbr.rel (%p251) target = $region32
        $region31: #{tpu_custom_call.1} parent=11 // pred_region
          _
        $region32: #{tpu_custom_call.1} parent=11 // pred_fallthru
          _
        // Predicated region
        $region33: #{tpu_custom_call.1} parent=11 // pred_check
          %p254 = pneg %p170
        $region34: #{tpu_custom_call.1} parent=11 // pred_check_branch
          %256 = sbr.rel (%p254) target = $region36
        $region35: #{tpu_custom_call.1} parent=11 // pred_region
          _
        $region36: #{tpu_custom_call.1} parent=11 // pred_fallthru
          _
        // Predicated region
        $region37: #{tpu_custom_call.1} parent=11 // pred_check
          %p257 = pneg %p191
        $region38: #{tpu_custom_call.1} parent=11 // pred_check_branch
          %259 = sbr.rel (%p257) target = $region40
        $region39: #{tpu_custom_call.1} parent=11 // pred_region
          _
        $region40: #{tpu_custom_call.1} parent=11 // pred_fallthru
          _
      $region12: #{tpu_custom_call.1} parent=5 // pred_fallthru
        _
      %p260 = scmp.lt.s32.totalorder %s18, 2
      // Predicated region
      $region41: #{tpu_custom_call.1} parent=5 // pred_check
        %p261 = pneg %p260
      $region42: #{tpu_custom_call.1} parent=5 // pred_check_branch
        %263 = sbr.rel (%p261) target = $region44
      $region43: #{tpu_custom_call.1} parent=5 // pred_region
        // Predicated region
        $region45: #{tpu_custom_call.1} parent=43 // pred_check
          %p264 = pneg %p59
        $region46: #{tpu_custom_call.1} parent=43 // pred_check_branch
          %266 = sbr.rel (%p264) target = $region48
        $region47: #{tpu_custom_call.1} parent=43 // pred_region
          %s267 = smul.u32 8, %s18
          %p268 = scmp.lt.s32.totalorder %s267, 15
          %s269 = scalar_select %p268, %s267, 15
          %s270 = smul.addr %s269, 8
          %s271 = scalar_lea.vmem %s1, %s270
          %s272 = smul.u32 8, %s18
        $region48: #{tpu_custom_call.1} parent=43 // pred_fallthru
          _
      $region44: #{tpu_custom_call.1} parent=5 // pred_fallthru
        _
      %p273 = scmp.le.s32.totalorder 1, %s18
      %p274 = scmp.lt.s32.totalorder %s18, 3
      %p275 = pnand %p273, %p274
      %p276 = pneg %p275
      // Predicated region
      $region49: #{tpu_custom_call.1} parent=5 // pred_check
        _
      $region50: #{tpu_custom_call.1} parent=5 // pred_check_branch
        %278 = sbr.rel (%p275) target = $region52
      $region51: #{tpu_custom_call.1} parent=5 // pred_region
        %s279 = ssub.s32 %s18, 1
        // Predicated region
        $region53: #{tpu_custom_call.1} parent=51 // pred_check
          %p280 = pneg %p39
        $region54: #{tpu_custom_call.1} parent=51 // pred_check_branch
          %282 = sbr.rel (%p280) target = $region56
        $region55: #{tpu_custom_call.1} parent=51 // pred_region
          %284 = dma.done [#allocation6], 16
        $region56: #{tpu_custom_call.1} parent=51 // pred_fallthru
          _
        %285 = sfence
        %p286 = pneg %p39
        %p287 = pneg %p36
        %s288 = smul.u32 8, %s23
        %p289 = scmp.lt.s32.totalorder %s288, 15
        %s290 = scalar_select %p289, %s288, 15
        %s291 = smul.addr %s290, 8
        %s292 = scalar_lea.vmem %s1, %s291
        %p293 = pneg %p65
        %p294 = pneg %p62
        %p295 = pneg %p86
        %p296 = pneg %p83
        %p297 = pneg %p107
        %p298 = pneg %p104
        %p299 = pneg %p128
        %p300 = pneg %p125
        %p301 = pneg %p149
        %p302 = pneg %p146
        %p303 = pneg %p170
        %p304 = pneg %p167
        %p305 = pneg %p191
        %p306 = pneg %p188
        %p307 = pneg %p217
        %p308 = pneg %p214
        %s309 = sand.u32 %s204, 1
        %s310 = scalar_lea.sflag [#allocation5], %s309
        %s311 = sand.u32 %s204, 1
        %s312 = smul.addr %s311, 2
        %s313 = scalar_lea.vmem [#allocation7], %s312
        %s314 = smul.u32 8, %s23
        %p315 = scmp.lt.s32.totalorder %s314, 15
        %s316 = scalar_select %p315, %s314, 15
        %s317 = smul.addr %s316, 8
        %s318 = scalar_lea.vmem %s1, %s317
        %s319 = smul.u32 8, %s23
        %s320 = sld [smem:[#allocation4]]
        %s321 = sld [smem:[#allocation4 + $0x1]]
        %s322 = sld [smem:[#allocation4 + $0x2]]
        %s323 = sld [smem:[#allocation4 + $0x3]]
        %v324 = vld [vmem:[%s318] sm:$0xff]
        %v325 = vld [vmem:[%s318 + $0x8] sm:$0xff]
        %v326 = vld [vmem:[%s318 + $0x10] sm:$0xff]
        %v327 = vld [vmem:[%s318 + $0x18] sm:$0xff]
        %v328 = vld [vmem:[%s318 + $0x20] sm:$0xff]
        %v329 = vld [vmem:[%s318 + $0x28] sm:$0xff]
        %v330 = vld [vmem:[%s318 + $0x30] sm:$0xff]
        %v331 = vld [vmem:[%s318 + $0x38] sm:$0xff]
        %v332 = vlaneseq
        %v333 = vshrl.u32 %v332, 7
        %v334 = vadd.s32 %v333, 8
        %v335 = vadd.s32 %v333, 16
        %v336 = vadd.s32 %v333, 24
        %v337 = vadd.s32 %v333, 32
        %v338 = vadd.s32 %v333, 40
        %v339 = vadd.s32 %v333, 48
        %v340 = vadd.s32 %v333, 56
        %vm341 = vcmp.gt.s32.totalorder %v333, 0
        %vm342 = vcmp.gt.s32.totalorder %v334, 0
        %vm343 = vcmp.gt.s32.totalorder %v335, 0
        %vm344 = vcmp.gt.s32.totalorder %v336, 0
        %vm345 = vcmp.gt.s32.totalorder %v337, 0
        %vm346 = vcmp.gt.s32.totalorder %v338, 0
        %vm347 = vcmp.gt.s32.totalorder %v339, 0
        %vm348 = vcmp.gt.s32.totalorder %v340, 0
        %v349 = vsel %vm341, 1, 0
        %v350 = vsel %vm342, 1, 0
        %v351 = vsel %vm343, 1, 0
        %v352 = vsel %vm344, 1, 0
        %v353 = vsel %vm345, 1, 0
        %v354 = vsel %vm346, 1, 0
        %v355 = vsel %vm347, 1, 0
        %v356 = vsel %vm348, 1, 0
        %v357 = vcvt.s32.f32 %v349
        %v358 = vcvt.s32.f32 %v350
        %v359 = vcvt.s32.f32 %v351
        %v360 = vcvt.s32.f32 %v352
        %v361 = vcvt.s32.f32 %v353
        %v362 = vcvt.s32.f32 %v354
        %v363 = vcvt.s32.f32 %v355
        %v364 = vcvt.s32.f32 %v356
        %vm365 = vcmp.lt.s32.totalorder %v333, 63
        %vm366 = vcmp.lt.s32.totalorder %v334, 63
        %vm367 = vcmp.lt.s32.totalorder %v335, 63
        %vm368 = vcmp.lt.s32.totalorder %v336, 63
        %vm369 = vcmp.lt.s32.totalorder %v337, 63
        %vm370 = vcmp.lt.s32.totalorder %v338, 63
        %vm371 = vcmp.lt.s32.totalorder %v339, 63
        %vm372 = vcmp.lt.s32.totalorder %v340, 63
        %v373 = vsel %vm365, 1, 0
        %v374 = vsel %vm366, 1, 0
        %v375 = vsel %vm367, 1, 0
        %v376 = vsel %vm368, 1, 0
        %v377 = vsel %vm369, 1, 0
        %v378 = vsel %vm370, 1, 0
        %v379 = vsel %vm371, 1, 0
        %v380 = vsel %vm372, 1, 0
        %v381 = vcvt.s32.f32 %v373
        %v382 = vcvt.s32.f32 %v374
        %v383 = vcvt.s32.f32 %v375
        %v384 = vcvt.s32.f32 %v376
        %v385 = vcvt.s32.f32 %v377
        %v386 = vcvt.s32.f32 %v378
        %v387 = vcvt.s32.f32 %v379
        %v388 = vcvt.s32.f32 %v380
        %v389 = vrot.slane %v324, 7
        %v390 = vrot.slane %v325, 7
        %v391 = vrot.slane %v326, 7
        %v392 = vrot.slane %v327, 7
        %v393 = vrot.slane %v328, 7
        %v394 = vrot.slane %v329, 7
        %v395 = vrot.slane %v330, 7
        %v396 = vrot.slane %v331, 7
        %vm397 = vcmp.lt.s32.totalorder %v333, 1
        %v398 = vsel %vm397, %v395, %v396
        %v399 = vsel %vm397, %v394, %v395
        %v400 = vsel %vm397, %v393, %v394
        %v401 = vsel %vm397, %v392, %v393
        %v402 = vsel %vm397, %v391, %v392
        %v403 = vsel %vm397, %v390, %v391
        %v404 = vsel %vm397, %v389, %v390
        %v405 = vsel %vm397, %v396, %v389
        %v406 = vmul.f32 %v357, %v405
        %v407 = vmul.f32 %v358, %v404
        %v408 = vmul.f32 %v359, %v403
        %v409 = vmul.f32 %v360, %v402
        %v410 = vmul.f32 %v361, %v401
        %v411 = vmul.f32 %v362, %v400
        %v412 = vmul.f32 %v363, %v399
        %v413 = vmul.f32 %v364, %v398
        %v414 = vrot.slane %v324, 1
        %v415 = vrot.slane %v325, 1
        %v416 = vrot.slane %v326, 1
        %v417 = vrot.slane %v327, 1
        %v418 = vrot.slane %v328, 1
        %v419 = vrot.slane %v329, 1
        %v420 = vrot.slane %v330, 1
        %v421 = vrot.slane %v331, 1
        %vm422 = vcmp.lt.s32.totalorder %v333, 7
        %v423 = vsel %vm422, %v420, %v421
        %v424 = vsel %vm422, %v419, %v420
        %v425 = vsel %vm422, %v418, %v419
        %v426 = vsel %vm422, %v417, %v418
        %v427 = vsel %vm422, %v416, %v417
        %v428 = vsel %vm422, %v415, %v416
        %v429 = vsel %vm422, %v414, %v415
        %v430 = vsel %vm422, %v421, %v414
        %v431 = vmul.f32 %v381, %v429
        %v432 = vmul.f32 %v382, %v428
        %v433 = vmul.f32 %v383, %v427
        %v434 = vmul.f32 %v384, %v426
        %v435 = vmul.f32 %v385, %v425
        %v436 = vmul.f32 %v386, %v424
        %v437 = vmul.f32 %v387, %v423
        %v438 = vmul.f32 %v388, %v430
        %v439 = vstv %s320
        %v440 = vmul.f32 %v439, %v406
        %v441 = vmul.f32 %v439, %v407
        %v442 = vmul.f32 %v439, %v408
        %v443 = vmul.f32 %v439, %v409
        %v444 = vmul.f32 %v439, %v410
        %v445 = vmul.f32 %v439, %v411
        %v446 = vmul.f32 %v439, %v412
        %v447 = vmul.f32 %v439, %v413
        %v448 = vstv %s321
        %v449 = vmul.f32 %v448, %v324
        %v450 = vmul.f32 %v448, %v325
        %v451 = vmul.f32 %v448, %v326
        %v452 = vmul.f32 %v448, %v327
        %v453 = vmul.f32 %v448, %v328
        %v454 = vmul.f32 %v448, %v329
        %v455 = vmul.f32 %v448, %v330
        %v456 = vmul.f32 %v448, %v331
        %v457 = vadd.f32 %v440, %v449
        %v458 = vadd.f32 %v441, %v450
        %v459 = vadd.f32 %v442, %v451
        %v460 = vadd.f32 %v443, %v452
        %v461 = vadd.f32 %v444, %v453
        %v462 = vadd.f32 %v445, %v454
        %v463 = vadd.f32 %v446, %v455
        %v464 = vadd.f32 %v447, %v456
        %v465 = vstv %s322
        %v466 = vmul.f32 %v465, %v431
        %v467 = vmul.f32 %v465, %v432
        %v468 = vmul.f32 %v465, %v433
        %v469 = vmul.f32 %v465, %v434
        %v470 = vmul.f32 %v465, %v435
        %v471 = vmul.f32 %v465, %v436
        %v472 = vmul.f32 %v465, %v437
        %v473 = vmul.f32 %v465, %v438
        %v474 = vadd.f32 %v457, %v466
        %v475 = vadd.f32 %v458, %v467
        %v476 = vadd.f32 %v459, %v468
        %v477 = vadd.f32 %v460, %v469
        %v478 = vadd.f32 %v461, %v470
        %v479 = vadd.f32 %v462, %v471
        %v480 = vadd.f32 %v463, %v472
        %v481 = vadd.f32 %v464, %v473
        %v482 = vstv %s323
        %v483 = vadd.f32 %v474, %v482
        %v484 = vadd.f32 %v475, %v482
        %v485 = vadd.f32 %v476, %v482
        %v486 = vadd.f32 %v477, %v482
        %v487 = vadd.f32 %v478, %v482
        %v488 = vadd.f32 %v479, %v482
        %v489 = vadd.f32 %v480, %v482
        %v490 = vadd.f32 %v481, %v482
        %v491 = vld [vmem:[%s2] sm:$0x1]
        %493 = vset.pattern.permute.xlu0 0
        %494 = vperm.xlu0 %493, %v483
        %v495 = vpop.permute.xlu0 %494
        %498 = vset.pattern.permute.xlu0 0
        %499 = vperm.xlu0 %498, %v484
        %v500 = vpop.permute.xlu0 %499
        %503 = vset.pattern.permute.xlu0 0
        %504 = vperm.xlu0 %503, %v485
        %v505 = vpop.permute.xlu0 %504
        %508 = vset.pattern.permute.xlu0 0
        %509 = vperm.xlu0 %508, %v486
        %v510 = vpop.permute.xlu0 %509
        %513 = vset.pattern.permute.xlu0 0
        %514 = vperm.xlu0 %513, %v487
        %v515 = vpop.permute.xlu0 %514
        %518 = vset.pattern.permute.xlu0 0
        %519 = vperm.xlu0 %518, %v488
        %v520 = vpop.permute.xlu0 %519
        %523 = vset.pattern.permute.xlu0 0
        %524 = vperm.xlu0 %523, %v489
        %v525 = vpop.permute.xlu0 %524
        %528 = vset.pattern.permute.xlu0 0
        %529 = vperm.xlu0 %528, %v490
        %v530 = vpop.permute.xlu0 %529
        %v533 = vperm.slane %v491, 0
        %v535 = vmul.f32 %v495, %v533
        %v536 = vmul.f32 %v500, %v533
        %v537 = vmul.f32 %v505, %v533
        %v538 = vmul.f32 %v510, %v533
        %v539 = vmul.f32 %v515, %v533
        %v540 = vmul.f32 %v520, %v533
        %v541 = vmul.f32 %v525, %v533
        %v542 = vmul.f32 %v530, %v533
        %v543 = vld [vmem:[%s3] sm:$0x1]
        %v545 = vperm.slane %v543, 0
        %v547 = vadd.f32 %v535, %v545
        %v548 = vadd.f32 %v536, %v545
        %v549 = vadd.f32 %v537, %v545
        %v550 = vadd.f32 %v538, %v545
        %v551 = vadd.f32 %v539, %v545
        %v552 = vadd.f32 %v540, %v545
        %v553 = vadd.f32 %v541, %v545
        %v554 = vadd.f32 %v542, %v545
        %v555 = vld [vmem:[%s4] sm:$0x1]
        %v557 = vperm.slane %v555, 0
        %v559 = vmul.f32 %v495, %v557
        %v560 = vmul.f32 %v500, %v557
        %v561 = vmul.f32 %v505, %v557
        %v562 = vmul.f32 %v510, %v557
        %v563 = vmul.f32 %v515, %v557
        %v564 = vmul.f32 %v520, %v557
        %v565 = vmul.f32 %v525, %v557
        %v566 = vmul.f32 %v530, %v557
        %v567 = vld [vmem:[%s5] sm:$0x1]
        %v569 = vperm.slane %v567, 0
        %v571 = vadd.f32 %v559, %v569
        %v572 = vadd.f32 %v560, %v569
        %v573 = vadd.f32 %v561, %v569
        %v574 = vadd.f32 %v562, %v569
        %v575 = vadd.f32 %v563, %v569
        %v576 = vadd.f32 %v564, %v569
        %v577 = vadd.f32 %v565, %v569
        %v578 = vadd.f32 %v566, %v569
        %v579 = vmax.f32 %v547, %v571
        %v580 = vmax.f32 %v548, %v572
        %v581 = vmax.f32 %v549, %v573
        %v582 = vmax.f32 %v550, %v574
        %v583 = vmax.f32 %v551, %v575
        %v584 = vmax.f32 %v552, %v576
        %v585 = vmax.f32 %v553, %v577
        %v586 = vmax.f32 %v554, %v578
        %v587 = vrot.slane %v579, 1
        %v588 = vrot.slane %v580, 1
        %v589 = vrot.slane %v581, 1
        %v590 = vrot.slane %v582, 1
        %v591 = vrot.slane %v583, 1
        %v592 = vrot.slane %v584, 1
        %v593 = vrot.slane %v585, 1
        %v594 = vrot.slane %v586, 1
        %v595 = vsel %vm422, %v593, %v594
        %v596 = vsel %vm422, %v592, %v593
        %v597 = vsel %vm422, %v591, %v592
        %v598 = vsel %vm422, %v590, %v591
        %v599 = vsel %vm422, %v589, %v590
        %v600 = vsel %vm422, %v588, %v589
        %v601 = vsel %vm422, %v587, %v588
        %v602 = vsel %vm422, %v594, %v587
        %v603 = vmax.f32 %v579, %v601
        %v604 = vmax.f32 %v580, %v600
        %v605 = vmax.f32 %v581, %v599
        %v606 = vmax.f32 %v582, %v598
        %v607 = vmax.f32 %v583, %v597
        %v608 = vmax.f32 %v584, %v596
        %v609 = vmax.f32 %v585, %v595
        %v610 = vmax.f32 %v586, %v602
        %vm611 = vcmask 261120
        %612 = vst.msk [vmem:[#allocation2] sm:$0xff] %vm611, %v603
        %613 = vst.msk [vmem:[#allocation2 + $0x8] sm:$0xff] %vm611, %v604
        %614 = vst.msk [vmem:[#allocation2 + $0x10] sm:$0xff] %vm611, %v605
        %615 = vst.msk [vmem:[#allocation2 + $0x18] sm:$0xff] %vm611, %v606
        %616 = vst.msk [vmem:[#allocation2 + $0x20] sm:$0xff] %vm611, %v607
        %617 = vst.msk [vmem:[#allocation2 + $0x28] sm:$0xff] %vm611, %v608
        %618 = vst.msk [vmem:[#allocation2 + $0x30] sm:$0xff] %vm611, %v609
        %619 = vst.msk [vmem:[#allocation2 + $0x38] sm:$0xff] %vm611, %v610
        %v620 = vld [vmem:[#allocation2] ss:$2 sm:$0xff]
        %s621 = scalar_lea.vmem [#allocation2], 16
        %v622 = vld [vmem:[%s621] ss:$2 sm:$0xff]
        %s623 = scalar_lea.vmem [#allocation2], 32
        %v624 = vld [vmem:[%s623] ss:$2 sm:$0xff]
        %s625 = scalar_lea.vmem [#allocation2], 48
        %v626 = vld [vmem:[%s625] ss:$2 sm:$0xff]
        %vm627 = vcmp.lt.s32.totalorder %v333, 31
        %vm628 = vcmp.lt.s32.totalorder %v334, 31
        %vm629 = vcmp.lt.s32.totalorder %v335, 31
        %vm630 = vcmp.lt.s32.totalorder %v336, 31
        %v631 = vsel %vm627, 1, 0
        %v632 = vsel %vm628, 1, 0
        %v633 = vsel %vm629, 1, 0
        %v634 = vsel %vm630, 1, 0
        %v635 = vcvt.s32.f32 %v631
        %v636 = vcvt.s32.f32 %v632
        %v637 = vcvt.s32.f32 %v633
        %v638 = vcvt.s32.f32 %v634
        %v639 = vrot.slane %v620, 7
        %v640 = vrot.slane %v622, 7
        %v641 = vrot.slane %v624, 7
        %v642 = vrot.slane %v626, 7
        %v643 = vsel %vm397, %v641, %v642
        %v644 = vsel %vm397, %v640, %v641
        %v645 = vsel %vm397, %v639, %v640
        %v646 = vsel %vm397, %v642, %v639
        %v647 = vmul.f32 %v357, %v646
        %v648 = vmul.f32 %v358, %v645
        %v649 = vmul.f32 %v359, %v644
        %v650 = vmul.f32 %v360, %v643
        %v651 = vrot.slane %v620, 1
        %v652 = vrot.slane %v622, 1
        %v653 = vrot.slane %v624, 1
        %v654 = vrot.slane %v626, 1
        %v655 = vsel %vm422, %v653, %v654
        %v656 = vsel %vm422, %v652, %v653
        %v657 = vsel %vm422, %v651, %v652
        %v658 = vsel %vm422, %v654, %v651
        %v659 = vmul.f32 %v635, %v657
        %v660 = vmul.f32 %v636, %v656
        %v661 = vmul.f32 %v637, %v655
        %v662 = vmul.f32 %v638, %v658
        %667 = vrot.lane.b32.xlu0 %v620, 32
        %v668 = vpop.permute.xlu0 %667
        %669 = vrot.lane.b32.xlu0 %v622, 32
        %v670 = vpop.permute.xlu0 %669
        %671 = vrot.lane.b32.xlu0 %v624, 32
        %v672 = vpop.permute.xlu0 %671
        %673 = vrot.lane.b32.xlu0 %v626, 32
        %v674 = vpop.permute.xlu0 %673
        %683 = vrot.lane.b32.xlu0 %v659, 64
        %v684 = vpop.permute.xlu0 %683
        %685 = vrot.lane.b32.xlu0 %v660, 64
        %v686 = vpop.permute.xlu0 %685
        %687 = vrot.lane.b32.xlu0 %v661, 64
        %v688 = vpop.permute.xlu0 %687
        %689 = vrot.lane.b32.xlu0 %v662, 64
        %v690 = vpop.permute.xlu0 %689
        %v695 = vsel %vm611, %v647, %v668
        %v696 = vsel %vm611, %v648, %v670
        %v697 = vsel %vm611, %v649, %v672
        %v698 = vsel %vm611, %v650, %v674
        %vm699 = vcmask 523264
        %v700 = vsel %vm699, %v695, %v684
        %v701 = vsel %vm699, %v696, %v686
        %v702 = vsel %vm699, %v697, %v688
        %v703 = vsel %vm699, %v698, %v690
        %v704 = vld [vmem:[%s6] sm:$0xff]
        %v705 = vld [vmem:[%s6 + $0x8] sm:$0xff]
        %v706 = vld [vmem:[%s6 + $0x10] sm:$0xff]
        %v707 = vld [vmem:[%s6 + $0x18] sm:$0xff]
        %v708 = vld [vmem:[%s6 + $0x20] sm:$0xff]
        %v709 = vld [vmem:[%s6 + $0x28] sm:$0xff]
        %v710 = vld [vmem:[%s6 + $0x30] sm:$0xff]
        %v711 = vld [vmem:[%s6 + $0x38] sm:$0xff]
        %v712 = vld [vmem:[%s6 + $0x40] sm:$0xff]
        %v713 = vld [vmem:[%s6 + $0x48] sm:$0xff]
        %v714 = vld [vmem:[%s6 + $0x50] sm:$0xff]
        %v715 = vld [vmem:[%s6 + $0x58] sm:$0xff]
        %v716 = vld [vmem:[%s7] sm:$0x1]
        %v718 = vperm.slane %v716, 0
        %vm720 = vcmask 785408
        %v722 = vsel %vm720, %v700, 0
        %v725 = vsel %vm720, %v701, 0
        %v728 = vsel %vm720, %v702, 0
        %v731 = vsel %vm720, %v703, 0
        %733 = vmatpush.msra.mxu0 0.0
        %734 = vmatpush.msra.mxu0 0.0
        %735 = vmatpush.msra.mxu0 0.0
        %736 = vmatpush.msra.mxu0 0.0
        %737 = vmatpush.msra.mxu0 %v715
        %738 = vmatpush.msra.mxu0 %v714
        %739 = vmatpush.msra.mxu0 %v713
        %740 = vmatpush.msra.mxu0 %v712
        %741 = vmatpush.msra.mxu0 %v711
        %742 = vmatpush.msra.mxu0 %v710
        %743 = vmatpush.msra.mxu0 %v709
        %744 = vmatpush.msra.mxu0 %v708
        %745 = vmatpush.msra.mxu0 %v707
        %746 = vmatpush.msra.mxu0 %v706
        %747 = vmatpush.msra.mxu0 %v705
        %748 = vmatpush.msra.mxu0 %v704
        %749 = vmatmul.f32.gmra.mxu0 %v722
        %v750 = vpop.f32.mrf.mxu0
        %v751 = vadd.f32 %v718, %v750
        %752 = vmatmul.f32.gmra.mxu0 %v725
        %v753 = vpop.f32.mrf.mxu0
        %v754 = vadd.f32 %v718, %v753
        %755 = vmatmul.f32.gmra.mxu0 %v728
        %v756 = vpop.f32.mrf.mxu0
        %v757 = vadd.f32 %v718, %v756
        %758 = vmatmul.f32.gmra.mxu0 %v731
        %v759 = vpop.f32.mrf.mxu0
        %v760 = vadd.f32 %v718, %v759
        %761 = vdwg.mxu0
        %766 = vrot.lane.b32.xlu0 %v751, 64
        %v767 = vpop.permute.xlu0 %766
        %768 = vrot.lane.b32.xlu0 %v754, 64
        %v769 = vpop.permute.xlu0 %768
        %770 = vrot.lane.b32.xlu0 %v757, 64
        %v771 = vpop.permute.xlu0 %770
        %772 = vrot.lane.b32.xlu0 %v760, 64
        %v773 = vpop.permute.xlu0 %772
        %v778 = vmax.f32 %v751, %v767
        %v779 = vmax.f32 %v754, %v769
        %v780 = vmax.f32 %v757, %v771
        %v781 = vmax.f32 %v760, %v773
        %v782 = vrot.slane %v778, 1
        %v783 = vrot.slane %v779, 1
        %v784 = vrot.slane %v780, 1
        %v785 = vrot.slane %v781, 1
        %v786 = vsel %vm422, %v784, %v785
        %v787 = vsel %vm422, %v783, %v784
        %v788 = vsel %vm422, %v782, %v783
        %v789 = vsel %vm422, %v785, %v782
        %v790 = vmax.f32 %v778, %v788
        %v791 = vmax.f32 %v779, %v787
        %v792 = vmax.f32 %v780, %v786
        %v793 = vmax.f32 %v781, %v789
        %794 = vst.msk [vmem:[#allocation3] sm:$0xff] %vm699, %v790
        %795 = vst.msk [vmem:[#allocation3 + $0x8] sm:$0xff] %vm699, %v791
        %796 = vst.msk [vmem:[#allocation3 + $0x10] sm:$0xff] %vm699, %v792
        %797 = vst.msk [vmem:[#allocation3 + $0x18] sm:$0xff] %vm699, %v793
        %v798 = vld [vmem:[#allocation3] ss:$2 sm:$0xff]
        %s799 = scalar_lea.vmem [#allocation3], 16
        %v800 = vld [vmem:[%s799] ss:$2 sm:$0xff]
        %v801 = vsel %vm699, %v798, 0.0
        %v802 = vsel %vm699, %v800, 0.0
        %v803 = vadd.f32 %v801, %v802
        %v804 = vrot.slane %v803, 4
        %v805 = vadd.f32 %v803, %v804
        %v806 = vrot.slane %v805, 2
        %v807 = vadd.f32 %v805, %v806
        %v808 = vrot.slane %v807, 1
        %v809 = vadd.f32 %v807, %v808
        %v810 = vmul.f32 %v809, 0.0625
        %v811 = vmul.f32 %v798, %v798
        %v812 = vmul.f32 %v800, %v800
        %v813 = vsel %vm699, %v811, 0.0
        %v814 = vsel %vm699, %v812, 0.0
        %v815 = vadd.f32 %v813, %v814
        %v816 = vrot.slane %v815, 4
        %v817 = vadd.f32 %v815, %v816
        %v818 = vrot.slane %v817, 2
        %v819 = vadd.f32 %v817, %v818
        %v820 = vrot.slane %v819, 1
        %v821 = vadd.f32 %v819, %v820
        %vm822 = vcmask 1040384
        %v823 = vsel %vm822, %v810, %v821
        %vm824 = vcmask 517120
        %825 = vst.msk [vmem:[%s313] sm:$0x3] %vm824, %v823
        %s826 = sand.u32 %s204, 1
        %s827 = scalar_lea.sflag [#allocation5], %s826
        %s828 = sand.u32 %s204, 1
        %s829 = smul.addr %s828, 2
        %s830 = scalar_lea.vmem [#allocation7], %s829
        // Predicated region
        $region57: #{tpu_custom_call.1} parent=51 // pred_check
          %p831 = pneg %p214
        $region58: #{tpu_custom_call.1} parent=51 // pred_check_branch
          %833 = sbr.rel (%p831) target = $region60
        $region59: #{tpu_custom_call.1} parent=51 // pred_region
          %835 = vsyncadd %s827, 0
          %s836 = smul.addr %s23, 2
          %s837 = scalar_lea.hbm %s8, %s836
          %s839 = sshll.u32 %s830, 4
          %s840 = int_to_ptr.vmem [resolvable:$true] %s839
          %s841 = sshll.u32 %s837, 4
          %s842 = int_to_ptr.hbm [resolvable:$true] %s841
          %844 = dma.vmem_to_hbm [thread:$0]  %s840, 32, %s842, %s827
        $region60: #{tpu_custom_call.1} parent=51 // pred_fallthru
          _
      $region52: #{tpu_custom_call.1} parent=5 // pred_fallthru
        _
      %p845 = scmp.le.s32.totalorder 2, %s18
      // Predicated region
      $region61: #{tpu_custom_call.1} parent=5 // pred_check
        %p846 = pneg %p845
      $region62: #{tpu_custom_call.1} parent=5 // pred_check_branch
        %848 = sbr.rel (%p846) target = $region64
      $region63: #{tpu_custom_call.1} parent=5 // pred_region
        %s849 = ssub.s32 %s18, 2
        // Predicated region
        $region65: #{tpu_custom_call.1} parent=63 // pred_check
          %p850 = pneg %p220
        $region66: #{tpu_custom_call.1} parent=63 // pred_check_branch
          %852 = sbr.rel (%p850) target = $region68
        $region67: #{tpu_custom_call.1} parent=63 // pred_region
          %s853 = sand.u32 %s205, 1
          %s854 = scalar_lea.sflag [#allocation5], %s853
          %s855 = sand.u32 %s205, 1
          %s856 = smul.addr %s855, 2
          %s857 = scalar_lea.vmem [#allocation7], %s856
          %859 = dma.done %s854, 32
        $region68: #{tpu_custom_call.1} parent=63 // pred_fallthru
          _
      $region64: #{tpu_custom_call.1} parent=5 // pred_fallthru
        _
    $region6: #{tpu_custom_call.1} parent=1 // loop_footer
      %s22 = sadd.s32 1, %s18
    $region7: #{tpu_custom_call.1} parent=1 // loop_footer_branch
      %17 = sbr.rel target = $region3
    $region8: #{tpu_custom_call.1} parent=1 // loop_exit
      _
    %860 = vsyncpa [#allocation5], 1
    %s861 = scalar_lea.sflag [#allocation5], 1
    %862 = vsyncpa %s861, 1
    %863 = vsyncpa [#allocation6], 1
    %s864 = scalar_lea.sflag [#allocation6], 1
    %865 = vsyncpa %s864, 1

</llo_original>
